<compile_context>
chip_gen: v7x
topology: tpu7x:2x2x1
jax: 0.10.0
libtpu: 0.0.40
codegen_flags: <defaults>
</compile_context>

<pallas_src>
import functools
from abc import abstractmethod
from dataclasses import dataclass
from typing import Optional

import jax
import jax.numpy as jnp
from jax.experimental import pallas as pl
from jax.experimental.pallas import tpu as pltpu

MISSING = "???"  # stand-in for omegaconf.MISSING

_LANE = 128          # lane width (last dim alignment)
_SUBLANE_BF16 = 16   # bf16 packs 16 rows per sublane group


def _round_up(x: int, m: int) -> int:
    return ((x + m - 1) // m) * m


def _vmem_capacity_bytes() -> int:
    """Trace-time VMEM capacity query with a conservative (v7x) fallback."""
    try:
        info = pltpu.get_tpu_info()
        cap = int(getattr(info, "vmem_capacity_bytes", 0))
        if cap > 0:
            return cap
    except Exception:
        pass
    return 64 << 20


# ----------------------------------------------------------------------------
# Pallas kernel: tiled dense projection y = x @ W + b
# ----------------------------------------------------------------------------
def _linear_kernel(x_ref, w_ref, b_ref, o_ref, acc_ref, *, tk, w_resident, gk):
    k = pl.program_id(2)

    @pl.when(k == 0)
    def _():
        acc_ref[...] = jnp.zeros_like(acc_ref)

    if w_resident and gk > 1:
        # W holds the full (K_pad, TN) slab; pick this k-step's (TK, TN) slice.
        off = pl.multiple_of(k * tk, tk)
        w_tile = w_ref[pl.ds(off, tk), :]
    else:
        w_tile = w_ref[...]

    # In-kernel bf16 cast of the x tile (free filler under the MXU); f32 acc.
    acc_ref[...] += jnp.dot(x_ref[...].astype(jnp.bfloat16), w_tile,
                            preferred_element_type=jnp.float32)

    @pl.when(k == pl.num_programs(2) - 1)
    def _():
        # f32 epilogue (bias add) on the f32 accumulator; cast on store.
        o_ref[...] = (acc_ref[...] + b_ref[...]).astype(o_ref.dtype)


class PallasLinear:
    """y = x @ W + b with weight prep (pad + bf16 cast) hoisted to init."""

    def __init__(self, w: jax.Array, b: jax.Array):
        w = jnp.asarray(w, jnp.float32)
        b = jnp.asarray(b, jnp.float32)
        K, N = w.shape
        assert b.shape == (N,)
        self.K, self.N = K, N
        self.w_raw, self.b_raw = w, b          # kept for the tiny-size XLA path

        cap = _vmem_capacity_bytes()
        self.vmem_cap = cap
        budget = int(cap * 0.5)                # ~50% headroom for compiler scratch
        big_vmem = cap >= (96 << 20)           # v5e/v6e: 128 MiB; v7x: 64 MiB

        K_pad0 = _round_up(K, _LANE)
        N_pad0 = _round_up(N, _LANE)

        # Preferred tiles (generation-aware): fatter tiles on the 128-MiB parts.
        self.pref_tm = 512 if big_vmem else 256
        pref_tk = 2048 if big_vmem else 1024   # big TK -> few acc RMW steps (v5e vst)
        pref_tn = 512 if big_vmem else 256

        TN = max(_LANE, (min(pref_tn, N_pad0) // _LANE) * _LANE)
        TK = max(_LANE, (min(pref_tk, K_pad0) // _LANE) * _LANE)

        def ws(tm, tk, tn, resident):
            w_b = (K_pad0 if resident else tk) * tn * 2 * 2   # bf16, double-buffered
            return (w_b
                    + tm * tk * 4 * 2      # x blocks (f32, double-buffered)
                    + tm * tn * 4 * 2      # output blocks
                    + tm * tn * 4          # f32 accumulator scratch
                    + tn * 4 * 2)          # bias

        # Can we keep a full-K slab of W resident?  (decided at the minimum TN)
        resident = ws(self.pref_tm, TK, _LANE, True) <= budget
        # Shrink TN, then TK, then the preferred TM until the working set fits.
        while TN > _LANE and ws(self.pref_tm, TK, TN, resident) > budget:
            TN = max(_LANE, (TN // 2 // _LANE) * _LANE)
        while TK > _LANE and ws(self.pref_tm, TK, TN, resident) > budget:
            TK = max(_LANE, (TK // 2 // _LANE) * _LANE)
        while (self.pref_tm > _SUBLANE_BF16
               and ws(self.pref_tm, TK, TN, resident) > budget):
            self.pref_tm = max(
                _SUBLANE_BF16, (self.pref_tm // 2 // _SUBLANE_BF16) * _SUBLANE_BF16)

        self.TK, self.TN, self.w_resident = TK, TN, resident
        self.K_pad = _round_up(K_pad0, TK)
        self.N_pad = _round_up(N_pad0, TN)

        # Weight prep hoisted out of forward: pad + cast exactly once.
        self.w_p = jnp.pad(w, ((0, self.K_pad - K),
                               (0, self.N_pad - N))).astype(jnp.bfloat16)
        self.b_p = (jnp.pad(b, (0, self.N_pad - N))
                    .astype(jnp.float32).reshape(1, self.N_pad))
        # TODO(synk): mark the resident W/bias specs pipeline_mode=pl.Buffered(1)
        # once single-buffered constant operands are exercised on this jax rev.

    def __call__(self, x2d: jax.Array, *, freeze: bool = False,
                 force_pallas: bool = False) -> jax.Array:
        M, K = x2d.shape
        assert K == self.K
        out_dtype = x2d.dtype

        # Tiny problems: per-grid-step overhead dominates -> plain XLA dot (f32).
        if not force_pallas and 2 * M * self.K * self.N < (1 << 22):
            w, b = self.w_raw, self.b_raw
            if freeze:
                w, b = jax.lax.stop_gradient(w), jax.lax.stop_gradient(b)
            return x2d @ w + b

        w_p = jax.lax.stop_gradient(self.w_p) if freeze else self.w_p
        b_p = jax.lax.stop_gradient(self.b_p) if freeze else self.b_p

        # --- TM: 16-aligned (bf16 packing), clamped so M_pad doesn't balloon ---
        TM = min(self.pref_tm, _round_up(M, _SUBLANE_BF16))
        TM = max(_SUBLANE_BF16, (TM // _SUBLANE_BF16) * _SUBLANE_BF16)
        while TM > _SUBLANE_BF16 and (_round_up(M, TM) - M) * 8 > _round_up(M, TM):
            TM = max(_SUBLANE_BF16, (TM // 2 // _SUBLANE_BF16) * _SUBLANE_BF16)
        M_pad = _round_up(M, TM)

        TK, TN, K_pad, N_pad = self.TK, self.TN, self.K_pad, self.N_pad
        gm, gn, gk = M_pad // TM, N_pad // TN, K_pad // TK

        # x stays in its native dtype (f32); the kernel casts tiles to bf16.
        x_p = jnp.pad(x2d, ((0, M_pad - M), (0, K_pad - K)))

        if self.w_resident:
            # Full-K slab; index only depends on the (outermost) N-tile axis,
            # so W is DMA'd from HBM exactly once over the entire grid.
            w_spec = pl.BlockSpec((K_pad, TN), lambda j, i, k: (0, j))
            w_hbm_passes = 1
        else:
            w_spec = pl.BlockSpec((TK, TN), lambda j, i, k: (k, j))
            w_hbm_passes = gm

        x_isz = jnp.dtype(x2d.dtype).itemsize
        o_isz = jnp.dtype(out_dtype).itemsize
        cost = pl.CostEstimate(
            flops=2 * M_pad * K_pad * N_pad,
            transcendentals=0,
            bytes_accessed=(gn * M_pad * K_pad * x_isz            # x re-read per N tile
                            + w_hbm_passes * K_pad * N_pad * 2    # W (bf16)
                            + gn * N_pad * 4                      # bias
                            + M_pad * N_pad * o_isz),             # output
        )

        ws_est = ((K_pad if self.w_resident else TK) * TN * 2 * 2
                  + TM * TK * x_isz * 2 + TM * TN * o_isz * 2
                  + TM * TN * 4 + TN * 4 * 2)
        vmem_limit = int(min(self.vmem_cap * 0.8, max(2 * ws_est, 32 << 20)))

        kernel = functools.partial(_linear_kernel, tk=TK,
                                   w_resident=self.w_resident, gk=gk)

        y_pad = pl.pallas_call(
            kernel,
            out_shape=jax.ShapeDtypeStruct((M_pad, N_pad), out_dtype),
            grid_spec=pltpu.PrefetchScalarGridSpec(
                num_scalar_prefetch=0,
                # N tiles outermost (keeps resident W fetched once),
                # M tiles next, K reduction innermost.
                grid=(gn, gm, gk),
                in_specs=[
                    pl.BlockSpec((TM, TK), lambda j, i, k: (i, k)),   # x tile
                    w_spec,                                           # W
                    pl.BlockSpec((1, TN), lambda j, i, k: (0, j)),    # bias
                ],
                out_specs=pl.BlockSpec((TM, TN), lambda j, i, k: (i, j)),
                scratch_shapes=[pltpu.VMEM((TM, TN), jnp.float32)],
            ),
            compiler_params=pltpu.CompilerParams(
                dimension_semantics=("parallel", "parallel", "arbitrary"),
                vmem_limit_bytes=vmem_limit),
            cost_estimate=cost,
        )(x_p, w_p, b_p)

        return y_pad[:M, :self.N]


# ----------------------------------------------------------------------------
# BaseModel contract, mirrored from the PyTorch module
# ----------------------------------------------------------------------------
class BaseModel:
    """JAX mirror of open-rodin BaseModel.

    Child models declare `_init(cfg)` and `_forward(data)`; `forward(data)`
    dispatches to `_forward`.  `trainable=False` is honoured by stopping
    gradients through the parameters at forward time (the analogue of
    `p.requires_grad = False`).
    """

    @dataclass
    class BaseModelConfig:
        name: str = MISSING
        trainable: bool = True
        timeit: Optional[bool] = False

    strict_conf = False
    required_keys = []
    are_weights_initialized = False

    def __init__(self, cfg: "BaseModel.BaseModelConfig"):
        self.cfg = cfg
        self.params = {}
        self._init(cfg)
        # Equivalent of: for p in self.parameters(): p.requires_grad = False
        self._freeze = not cfg.trainable

    def _maybe_freeze(self, params):
        if self._freeze:
            return jax.tree_util.tree_map(jax.lax.stop_gradient, params)
        return params

    def forward(self, data):
        return self._forward(data)

    __call__ = forward

    @abstractmethod
    def _init(self, cfg):
        # TODO(synk): abstract in the source module; no concrete compute to translate here.
        raise NotImplementedError("Init method must be implemented")

    @abstractmethod
    def _forward(self, data):
        # TODO(synk): abstract in the source module; no concrete compute to translate here.
        raise NotImplementedError("Forward method must be implemented")


# ----------------------------------------------------------------------------
# Minimal concrete child so the Pallas hot path is exercised
# ----------------------------------------------------------------------------
class LinearDemoModel(BaseModel):
    """Demo child: a single dense projection, its matmul done in Pallas."""

    def _init(self, cfg):
        d_in, d_out = 32, 32
        key = jax.random.PRNGKey(0)
        kw, kb = jax.random.split(key)
        self.params = {
            "w": (jax.random.normal(kw, (d_in, d_out), jnp.float32)
                  / jnp.sqrt(jnp.float32(d_in))),
            "b": jax.random.normal(kb, (d_out,), jnp.float32) * 0.01,
        }
        # Weight pad + bf16 cast happens ONCE here, not per forward.
        self.proj = PallasLinear(self.params["w"], self.params["b"])
        self.are_weights_initialized = True

    def _forward(self, data):
        x = data["x"]                         # [B, S, D]
        B, S, D = x.shape
        x2d = x.reshape(B * S, D)             # glue reshape in plain JAX
        # NOTE: force_pallas=True so the kernel is exercised even at demo size;
        # a production wrapper would leave the size gate active.
        y2d = self.proj(x2d, freeze=self._freeze, force_pallas=True)
        return {"pred": y2d.reshape(B, S, -1)}


# ----------------------------------------------------------------------------
if __name__ == "__main__":
    key = jax.random.PRNGKey(0)
    x = jax.random.normal(key, (2, 8, 32), jnp.float32)   # batch=2, seq=8, hidden=32

    cfg = BaseModel.BaseModelConfig(name="linear_demo", trainable=True, timeit=False)
    model = LinearDemoModel(cfg)

    out = model({"x": x})
    pred = jax.block_until_ready(out["pred"])

    # The kernel feeds the MXU bf16 inputs with f32 accumulation, so compare
    # against the same bf16-rounded-input reference computed in f32.
    xb = x.reshape(-1, 32).astype(jnp.bfloat16).astype(jnp.float32)
    wb = model.params["w"].astype(jnp.bfloat16).astype(jnp.float32)
    ref = (xb @ wb + model.params["b"]).reshape(2, 8, 32)
    assert pred.shape == (2, 8, 32)
    assert jnp.allclose(pred, ref, atol=2e-3, rtol=2e-3)

    print("KERNEL_OK")
</pallas_src>

<mosaic_0001>
module attributes {stable_mosaic.version = 11 : i64} {
  func.func @_linear_kernel(%arg0: i32, %arg1: i32, %arg2: i32, %arg3: memref<16x128xf32, #tpu.memory_space<vmem>>, %arg4: memref<128x128xbf16, #tpu.memory_space<vmem>>, %arg5: memref<1x128xf32, #tpu.memory_space<vmem>>, %arg6: memref<16x128xf32, #tpu.memory_space<vmem>>, %arg7: memref<16x128xf32, #tpu.memory_space<vmem>>) attributes {dimension_semantics = [#tpu.dimension_semantics<parallel>, #tpu.dimension_semantics<parallel>, #tpu.dimension_semantics<arbitrary>], iteration_bounds = array<i64: 1, 1, 1>, scalar_prefetch = 0 : i64, scratch_operands = 1 : i64, tpu.core_type = #tpu.core_type<tc>, window_params = [{transform_indices = @transform_0, window_bounds = array<i64: 16, 128>}, {transform_indices = @transform_1, window_bounds = array<i64: 128, 128>}, {transform_indices = @transform_2, window_bounds = array<i64: 1, 128>}, {transform_indices = @transform_3, window_bounds = array<i64: 16, 128>}]} {
    %c0_i32 = arith.constant 0 : i32
    %0 = arith.cmpi eq, %arg2, %c0_i32 : i32
    %1 = arith.extui %0 : i1 to i32
    %c0_i32_0 = arith.constant 0 : i32
    %2 = arith.cmpi ne, %1, %c0_i32_0 : i32
    scf.if %2 {
      %cst_10 = arith.constant 0.000000e+00 : f32
      %13 = vector.broadcast %cst_10 : f32 to vector<16x128xf32>
      %c0_11 = arith.constant 0 : index
      %c0_12 = arith.constant 0 : index
      %14 = vector.load %arg7[%c0_11, %c0_12] : memref<16x128xf32, #tpu.memory_space<vmem>>, vector<16x128xf32>
      tpu.vector_store %arg7[%c0_11, %c0_12], %13 {strides = array<i32>} : memref<16x128xf32, #tpu.memory_space<vmem>>, vector<16x128xf32>,
    } else {
    }
    %c0 = arith.constant 0 : index
    %c0_1 = arith.constant 0 : index
    %3 = vector.load %arg4[%c0, %c0_1] : memref<128x128xbf16, #tpu.memory_space<vmem>>, vector<128x128xbf16>
    %c0_2 = arith.constant 0 : index
    %c0_3 = arith.constant 0 : index
    %4 = vector.load %arg7[%c0_2, %c0_3] : memref<16x128xf32, #tpu.memory_space<vmem>>, vector<16x128xf32>
    %c0_4 = arith.constant 0 : index
    %c0_5 = arith.constant 0 : index
    %5 = vector.load %arg3[%c0_4, %c0_5] : memref<16x128xf32, #tpu.memory_space<vmem>>, vector<16x128xf32>
    %6 = arith.truncf %5 : vector<16x128xf32> to vector<16x128xbf16>
    %cst = arith.constant dense<0.000000e+00> : vector<16x128xf32>
    %7 = tpu.matmul %6, %3, %cst {dimension_numbers = #tpu.dot_dimension_numbers<[1], [0], [0], [1], [0, 0, 1, 1], [], []>} : vector<16x128xbf16>, vector<128x128xbf16>, vector<16x128xf32> -> vector<16x128xf32>
    %8 = arith.addf %4, %7 : vector<16x128xf32>
    %c0_6 = arith.constant 0 : index
    %c0_7 = arith.constant 0 : index
    %9 = vector.load %arg7[%c0_6, %c0_7] : memref<16x128xf32, #tpu.memory_space<vmem>>, vector<16x128xf32>
    tpu.vector_store %arg7[%c0_6, %c0_7], %8 {strides = array<i32>} : memref<16x128xf32, #tpu.memory_space<vmem>>, vector<16x128xf32>,
    %c0_i32_8 = arith.constant 0 : i32
    %10 = arith.cmpi eq, %arg2, %c0_i32_8 : i32
    %11 = arith.extui %10 : i1 to i32
    %c0_i32_9 = arith.constant 0 : i32
    %12 = arith.cmpi ne, %11, %c0_i32_9 : i32
    scf.if %12 {
      %c0_10 = arith.constant 0 : index
      %c0_11 = arith.constant 0 : index
      %13 = vector.load %arg7[%c0_10, %c0_11] : memref<16x128xf32, #tpu.memory_space<vmem>>, vector<16x128xf32>
      %c0_12 = arith.constant 0 : index
      %c0_13 = arith.constant 0 : index
      %14 = vector.load %arg5[%c0_12, %c0_13] : memref<1x128xf32, #tpu.memory_space<vmem>>, vector<1x128xf32>
      %15 = vector.broadcast %14 : vector<1x128xf32> to vector<16x128xf32>
      %16 = arith.addf %13, %15 : vector<16x128xf32>
      %c0_14 = arith.constant 0 : index
      %c0_15 = arith.constant 0 : index
      %17 = vector.load %arg6[%c0_14, %c0_15] : memref<16x128xf32, #tpu.memory_space<vmem>>, vector<16x128xf32>
      tpu.vector_store %arg6[%c0_14, %c0_15], %16 {strides = array<i32>} : memref<16x128xf32, #tpu.memory_space<vmem>>, vector<16x128xf32>,
    } else {
    }
    return
  }
  func.func @transform_0(%arg0: i32, %arg1: i32, %arg2: i32) -> (i32, i32) {
    %c0_i32 = arith.constant 0 : i32
    return %arg1, %arg2 : i32, i32
  }
  func.func @transform_1(%arg0: i32, %arg1: i32, %arg2: i32) -> (i32, i32) {
    %c0_i32 = arith.constant 0 : i32
    %c0_i32_0 = arith.constant 0 : i32
    return %c0_i32, %arg0 : i32, i32
  }
  func.func @transform_2(%arg0: i32, %arg1: i32, %arg2: i32) -> (i32, i32) {
    %c0_i32 = arith.constant 0 : i32
    %c0_i32_0 = arith.constant 0 : i32
    return %c0_i32, %arg0 : i32, i32
  }
  func.func @transform_3(%arg0: i32, %arg1: i32, %arg2: i32) -> (i32, i32) {
    %c0_i32 = arith.constant 0 : i32
    return %arg1, %arg0 : i32, i32
  }
}

</mosaic_0001>

<llo_original>
// kernel: tpu_custom_call.1
$region0: #{tpu_custom_call.1}
  #allocation0 [shape = 'u32[]', space=smem, size = 0x4, offset = 0x4, fixed_abs, tag = 'smem constant byte address 0x4 - core index']
  #allocation1 [shape = 'u32[144,128]{1,0:T(1,128)}', space=vmem, size = 0x12000, scoped, tag = 'internal scratch']
  #allocation2 [shape = 'f32[16,128]{1,0:T(8,128)}', space=vmem, size = 0x2000, scoped, tag = 'scratch operand']
  %s0 = inlined_call_operand.hbm [shape: f32[16,128], index: 0, kind: input, shape index: {}]
  %s1 = inlined_call_operand.hbm [shape: bf16[128,128], index: 1, kind: input, shape index: {}]
  %s2 = inlined_call_operand.vmem [shape: f32[1,128], index: 2, kind: input, shape index: {}]
  %s3 = inlined_call_operand.hbm [shape: f32[16,128], index: 3, kind: output, shape index: {}]
  %s4 = sld [smem:[#allocation0]]
  $region38: #{tpu_custom_call.1} parent=0
    _
  %s6 = ssub.s32 1, %s4
  %s7 = scalar_select 0, %s6, %s4
  $region1: #{tpu_custom_call.1} parent=0
    #allocation3 [shape = 'u8[8192]{0}', space=vmem, size = 0x2000, scoped, tag = 'input window, operand 0, single buffered']
    #allocation4 [shape = 's32[1]{0}', space=sflag, size = 0x4, scoped, tag = 'scoped memory for tpu_custom_call.1']
    #allocation5 [shape = 's32[1]{0}', space=sflag, size = 0x4, scoped, tag = 'scoped memory for tpu_custom_call.1']
    #allocation6 [shape = 'u8[32768]{0}', space=vmem, size = 0x8000, scoped, tag = 'input window, operand 1, single buffered']
    #allocation7 [shape = 's32[1]{0}', space=sflag, size = 0x4, scoped, tag = 'scoped memory for tpu_custom_call.1']
    #allocation8 [shape = 'u8[8192]{0}', space=vmem, size = 0x2000, scoped, tag = 'output window, operand 0, single buffered']
    %8 = vsyncpa [#allocation4], 0
    %9 = vsyncpa [#allocation7], 0
    %10 = vsyncpa [#allocation5], 0
    // Predicated region
    $region2: #{tpu_custom_call.1} parent=1 // pred_check
      _
    $region3: #{tpu_custom_call.1} parent=1 // pred_check_branch
      %12 = sbr.rel (0) target = $region5
    $region4: #{tpu_custom_call.1} parent=1 // pred_region
      %s14 = ssub.s32 256, 256
      %15 = vsyncadd [#allocation4], %s14
      %s16 = sshll.u32 [#allocation3], 4
      %s17 = int_to_ptr.vmem [resolvable:$true] %s16
      %22 = dma.hbm_to_vmem [thread:$0]  %s0, 256, %s17, [#allocation4], 128, 128, 8
    $region5: #{tpu_custom_call.1} parent=1 // pred_fallthru
      _
    // Predicated region
    $region6: #{tpu_custom_call.1} parent=1 // pred_check
      _
    $region7: #{tpu_custom_call.1} parent=1 // pred_check_branch
      %24 = sbr.rel (0) target = $region9
    $region8: #{tpu_custom_call.1} parent=1 // pred_region
      %s26 = ssub.s32 1024, 1024
      %27 = vsyncadd [#allocation7], %s26
      %s28 = sshll.u32 [#allocation6], 4
      %s29 = int_to_ptr.vmem [resolvable:$true] %s28
      %34 = dma.hbm_to_vmem [thread:$0]  %s1, 1024, %s29, [#allocation7], 64, 64, 4
    $region9: #{tpu_custom_call.1} parent=1 // pred_fallthru
      _
    // Predicated region
    $region10: #{tpu_custom_call.1} parent=1 // pred_check
      _
    $region11: #{tpu_custom_call.1} parent=1 // pred_check_branch
      %36 = sbr.rel (0) target = $region13
    $region12: #{tpu_custom_call.1} parent=1 // pred_region
      _
    $region13: #{tpu_custom_call.1} parent=1 // pred_fallthru
      _
    // Predicated region
    $region14: #{tpu_custom_call.1} parent=1 // pred_check
      _
    $region15: #{tpu_custom_call.1} parent=1 // pred_check_branch
      %38 = sbr.rel (0) target = $region17
    $region16: #{tpu_custom_call.1} parent=1 // pred_region
      %39 = dma.done [#allocation4], 256
    $region17: #{tpu_custom_call.1} parent=1 // pred_fallthru
      _
    // Predicated region
    $region18: #{tpu_custom_call.1} parent=1 // pred_check
      _
    $region19: #{tpu_custom_call.1} parent=1 // pred_check_branch
      %41 = sbr.rel (0) target = $region21
    $region20: #{tpu_custom_call.1} parent=1 // pred_region
      %42 = dma.done [#allocation7], 1024
    $region21: #{tpu_custom_call.1} parent=1 // pred_fallthru
      _
    %p44 = scmp.eq.s32.totalorder 0, 0
    // Predicated region
    $region22: #{tpu_custom_call.1} parent=1 // pred_check
      %p45 = pneg %p44
    $region23: #{tpu_custom_call.1} parent=1 // pred_check_branch
      %47 = sbr.rel (%p45) target = $region25
    $region24: #{tpu_custom_call.1} parent=1 // pred_region
      %48 = vst [vmem:[#allocation2] sm:$0xff] 0.0
      %49 = vst [vmem:[#allocation2 + $0x8] sm:$0xff] 0.0
    $region25: #{tpu_custom_call.1} parent=1 // pred_fallthru
      _
    %v50 = vld [vmem:[#allocation6] sm:$0xf]
    %v51 = vld [vmem:[#allocation6 + $0x4] sm:$0xf]
    %v52 = vld [vmem:[#allocation6 + $0x8] sm:$0xf]
    %v53 = vld [vmem:[#allocation6 + $0xc] sm:$0xf]
    %v54 = vld [vmem:[#allocation6 + $0x10] sm:$0xf]
    %v55 = vld [vmem:[#allocation6 + $0x14] sm:$0xf]
    %v56 = vld [vmem:[#allocation6 + $0x18] sm:$0xf]
    %v57 = vld [vmem:[#allocation6 + $0x1c] sm:$0xf]
    %v58 = vld [vmem:[#allocation6 + $0x20] sm:$0xf]
    %v59 = vld [vmem:[#allocation6 + $0x24] sm:$0xf]
    %v60 = vld [vmem:[#allocation6 + $0x28] sm:$0xf]
    %v61 = vld [vmem:[#allocation6 + $0x2c] sm:$0xf]
    %v62 = vld [vmem:[#allocation6 + $0x30] sm:$0xf]
    %v63 = vld [vmem:[#allocation6 + $0x34] sm:$0xf]
    %v64 = vld [vmem:[#allocation6 + $0x38] sm:$0xf]
    %v65 = vld [vmem:[#allocation6 + $0x3c] sm:$0xf]
    %v66 = vld [vmem:[#allocation2] sm:$0xff]
    %v67 = vld [vmem:[#allocation2 + $0x8] sm:$0xff]
    %v68 = vld [vmem:[#allocation3] sm:$0xff]
    %v69 = vld [vmem:[#allocation3 + $0x8] sm:$0xff]
    %v70 = vpack.c.bf16 %v69, %v68
    %v87 = vunpack.c.l.b16 %v50
    %v88 = vunpack.c.l.b16 %v51
    %v89 = vunpack.c.l.b16 %v52
    %v90 = vunpack.c.l.b16 %v53
    %v91 = vunpack.c.l.b16 %v54
    %v92 = vunpack.c.l.b16 %v55
    %v93 = vunpack.c.l.b16 %v56
    %v94 = vunpack.c.l.b16 %v57
    %v95 = vunpack.c.l.b16 %v58
    %v96 = vunpack.c.l.b16 %v59
    %v97 = vunpack.c.l.b16 %v60
    %v98 = vunpack.c.l.b16 %v61
    %v99 = vunpack.c.l.b16 %v62
    %v100 = vunpack.c.l.b16 %v63
    %v101 = vunpack.c.l.b16 %v64
    %v102 = vunpack.c.l.b16 %v65
    %v103 = vpack.c.b16 %v88, %v87
    %v104 = vpack.c.b16 %v90, %v89
    %v105 = vpack.c.b16 %v92, %v91
    %v106 = vpack.c.b16 %v94, %v93
    %v107 = vpack.c.b16 %v96, %v95
    %v108 = vpack.c.b16 %v98, %v97
    %v109 = vpack.c.b16 %v100, %v99
    %v110 = vpack.c.b16 %v102, %v101
    %119 = vmatprep.subr.bf16.mxu0 0
    %120 = vmatpush1.bf16.msra.mxu0 %v103
    %121 = vmatprep.subr.bf16.mxu0 0
    %122 = vmatpush1.bf16.msra.mxu0 %v104
    %123 = vmatprep.subr.bf16.mxu0 0
    %124 = vmatpush1.bf16.msra.mxu0 %v105
    %125 = vmatprep.subr.bf16.mxu0 0
    %126 = vmatpush1.bf16.msra.mxu0 %v106
    %127 = vmatprep.subr.bf16.mxu0 0
    %128 = vmatpush1.bf16.msra.mxu0 %v107
    %129 = vmatprep.subr.bf16.mxu0 0
    %130 = vmatpush1.bf16.msra.mxu0 %v108
    %131 = vmatprep.subr.bf16.mxu0 0
    %132 = vmatpush1.bf16.msra.mxu0 %v109
    %133 = vmatprep.subr.bf16.mxu0 0
    %134 = vmatpush1.bf16.msra.mxu0 %v110
    %135 = vmatprep.subr.bf16.mxu0 0
    %136 = vmatpush1.bf16.msra.mxu0 0
    %137 = vmatprep.subr.bf16.mxu0 0
    %138 = vmatpush1.bf16.msra.mxu0 0
    %139 = vmatprep.subr.bf16.mxu0 0
    %140 = vmatpush1.bf16.msra.mxu0 0
    %141 = vmatprep.subr.bf16.mxu0 0
    %142 = vmatpush1.bf16.msra.mxu0 0
    %143 = vmatprep.subr.bf16.mxu0 0
    %144 = vmatpush1.bf16.msra.mxu0 0
    %145 = vmatprep.subr.bf16.mxu0 0
    %146 = vmatpush1.bf16.msra.mxu0 0
    %147 = vmatprep.subr.bf16.mxu0 0
    %148 = vmatpush1.bf16.msra.mxu0 0
    %149 = vmatprep.subr.bf16.mxu0 0
    %150 = vmatpush1.bf16.msra.mxu0 0
    %151 = vmatprep.mubr.bf16.mxu0 0
    %152 = vmatmul.mubr.bf16.gmra.mrb[0].mxu0 %v70
    %v153 = vpop.f32.mrb[0].mxu0
    %v154 = vadd.f32 0.0, %v153
    %v155 = vpop.f32.mrb[0].mxu0
    %v156 = vpop.f32.mrb[0].mxu0
    %v157 = vadd.f32 0.0, %v156
    %v158 = vpop.f32.mrb[0].mxu0
    %159 = vdwg.mxu0
    %v160 = vadd.f32 %v66, %v154
    %v161 = vadd.f32 %v67, %v157
    %162 = vst [vmem:[#allocation2] sm:$0xff] %v160
    %163 = vst [vmem:[#allocation2 + $0x8] sm:$0xff] %v161
    // Predicated region
    $region26: #{tpu_custom_call.1} parent=1 // pred_check
      %p164 = pneg %p44
    $region27: #{tpu_custom_call.1} parent=1 // pred_check_branch
      %166 = sbr.rel (%p164) target = $region29
    $region28: #{tpu_custom_call.1} parent=1 // pred_region
      %v167 = vld [vmem:[#allocation2] sm:$0xff]
      %v168 = vld [vmem:[#allocation2 + $0x8] sm:$0xff]
      %v169 = vld [vmem:[%s2] sm:$0x1]
      %v171 = vlaneseq
      %v172 = vshrl.u32 %v171, 7
      %v173 = vsub.s32 0, %v172
      %v174 = vrot.slane %v169, %v173
      %v176 = vadd.f32 %v167, %v174
      %v177 = vadd.f32 %v168, %v174
      %178 = vst [vmem:[#allocation8] sm:$0xff] %v176
      %179 = vst [vmem:[#allocation8 + $0x8] sm:$0xff] %v177
    $region29: #{tpu_custom_call.1} parent=1 // pred_fallthru
      _
    // Predicated region
    $region30: #{tpu_custom_call.1} parent=1 // pred_check
      _
    $region31: #{tpu_custom_call.1} parent=1 // pred_check_branch
      %181 = sbr.rel (0) target = $region33
    $region32: #{tpu_custom_call.1} parent=1 // pred_region
      %s183 = ssub.s32 256, 256
      %184 = vsyncadd [#allocation5], %s183
      %s185 = sshll.u32 [#allocation8], 4
      %s186 = int_to_ptr.vmem [resolvable:$true] %s185
      %191 = dma.vmem_to_hbm [thread:$0]  %s186, 256, %s3, [#allocation5], 128, 128, 8
    $region33: #{tpu_custom_call.1} parent=1 // pred_fallthru
      _
    // Predicated region
    $region34: #{tpu_custom_call.1} parent=1 // pred_check
      _
    $region35: #{tpu_custom_call.1} parent=1 // pred_check_branch
      %193 = sbr.rel (0) target = $region37
    $region36: #{tpu_custom_call.1} parent=1 // pred_region
      %194 = dma.done [#allocation5], 256
    $region37: #{tpu_custom_call.1} parent=1 // pred_fallthru
      _
    %195 = vsyncpa [#allocation4], 1
    %196 = vsyncpa [#allocation7], 1
    %197 = vsyncpa [#allocation5], 1

</llo_original>
